<compile_context>
chip_gen: v7x
topology: tpu7x:2x2x1
jax: 0.10.0
libtpu: 0.0.40
codegen_flags: <defaults>
</compile_context>

<pallas_src>
import math
import functools

import jax
import jax.numpy as jnp
from jax.experimental import pallas as pl
from jax.experimental.pallas import tpu as pltpu


# Below this output size, a pallas_call's fixed overhead dominates: use XLA pad.
_SMALL_TENSOR_BYTES = 1 * 1024 * 1024
# Target combined (in + out, single-buffered) block footprint per grid step.
_TARGET_BLOCK_BYTES = 8 * 1024 * 1024


def _same_pad_amounts(in_h, in_w, kernel_size, stride):
    """Exactly replicates the Python arithmetic in Conv2dSamePad.forward."""
    kh, kw = kernel_size
    sh, sw = stride
    out_h = math.ceil(float(in_h) / float(sh))
    out_w = math.ceil(float(in_w) / float(sw))
    pad_along_h = (out_h - 1) * sh + kh - in_h
    pad_along_w = (out_w - 1) * sw + kw - in_w
    pad_top = math.floor(pad_along_h / 2)
    pad_left = math.floor(pad_along_w / 2)
    pad_bottom = pad_along_h - pad_top
    pad_right = pad_along_w - pad_left
    return pad_top, pad_bottom, pad_left, pad_right


def _phys_plane_bytes(h, w, dtype):
    """Physical VMEM bytes of one (h, w) plane after (sublane, lane) padding."""
    itemsize = jnp.dtype(dtype).itemsize
    sub = max(8, 32 // itemsize)          # 8 (f32), 16 (bf16), 32 (int8/fp8)
    ph = -(-h // sub) * sub
    pw = -(-w // 128) * 128
    return ph * pw * itemsize


def _vmem_budget_and_limit():
    """(buffer budget, Mosaic vmem_limit_bytes), generation-aware."""
    try:
        cap = pltpu.get_tpu_info().vmem_capacity_bytes
    except Exception:  # no TPU info available -> assume the smallest (v7x-like)
        cap = 64 * 1024 * 1024
    if cap >= 96 * 1024 * 1024:           # v5e / v6e: 128 MiB physical VMEM
        return 80 * 1024 * 1024, 100 * 1024 * 1024
    return 32 * 1024 * 1024, 48 * 1024 * 1024   # v7x: 64 MiB physical VMEM


def _pad_kernel(x_ref, o_ref, *, pad_top, pad_bottom, pad_left, pad_right,
                in_h, in_w):
    # x_ref: (1, C_TILE, in_h, in_w)   o_ref: (1, C_TILE, out_h, out_w)
    # All pad amounts are compile-time Python ints, so the `if`s below are
    # resolved at trace time: we emit stores only for strips that exist, and
    # every element of the output block is written exactly once.
    _, ct, out_h, out_w = o_ref.shape
    dtype = o_ref.dtype

    # Top / bottom zero strips: already full-width, lane-dense stores.
    if pad_top > 0:
        o_ref[:, :, 0:pad_top, :] = jnp.zeros((1, ct, pad_top, out_w), dtype)
    if pad_bottom > 0:
        o_ref[:, :, pad_top + in_h:out_h, :] = jnp.zeros(
            (1, ct, pad_bottom, out_w), dtype)

    # Fuse left-band zero + interior copy + right-band zero into ONE full-width
    # store at lane offset 0: build the padded band in registers (cheap VPU/XLU
    # work) instead of issuing narrow masked vst.msk stores at a lane offset.
    parts = []
    if pad_left > 0:
        parts.append(jnp.zeros((1, ct, in_h, pad_left), dtype))
    parts.append(x_ref[...].astype(dtype))
    if pad_right > 0:
        parts.append(jnp.zeros((1, ct, in_h, pad_right), dtype))
    band = parts[0] if len(parts) == 1 else jnp.concatenate(parts, axis=3)
    o_ref[:, :, pad_top:pad_top + in_h, :] = band


def conv2d_same_pad(x, kernel_size, stride, *, use_pallas=None):
    """x: (N, C, H, W) -> TF-'SAME'-padded tensor (same semantics as F.pad)."""
    if not isinstance(kernel_size, (list, tuple)):
        kernel_size = [kernel_size, kernel_size]
    if not isinstance(stride, (list, tuple)):
        stride = [stride, stride]

    n, c, in_h, in_w = x.shape
    pt, pb, plft, prgt = _same_pad_amounts(in_h, in_w, kernel_size, stride)

    # Negative 'SAME' padding (kernel < stride): F.pad crops.  Do the crop as a
    # cheap XLA slice, then zero-pad only the non-negative amounts.
    crop_t, crop_b = max(-pt, 0), max(-pb, 0)
    crop_l, crop_r = max(-plft, 0), max(-prgt, 0)
    if crop_t or crop_b or crop_l or crop_r:
        x = x[:, :, crop_t:in_h - crop_b, crop_l:in_w - crop_r]
        n, c, in_h, in_w = x.shape
        pt, pb, plft, prgt = max(pt, 0), max(pb, 0), max(plft, 0), max(prgt, 0)

    if pt == 0 and pb == 0 and plft == 0 and prgt == 0:
        return x

    out_h = in_h + pt + pb
    out_w = in_w + plft + prgt
    itemsize = jnp.dtype(x.dtype).itemsize

    budget, vmem_limit = _vmem_budget_and_limit()
    in_plane = _phys_plane_bytes(in_h, in_w, x.dtype)
    out_plane = _phys_plane_bytes(out_h, out_w, x.dtype)
    single_ch = in_plane + out_plane          # one channel, single-buffered
    double_ch = 2 * single_ch                 # double-buffered in + out blocks

    out_bytes = n * c * out_h * out_w * itemsize
    if use_pallas is None:
        use_pallas = out_bytes >= _SMALL_TENSOR_BYTES

    if (not use_pallas) or double_ch > budget:
        # Small tensors: pallas_call overhead dominates -> plain XLA pad wins.
        # TODO(synk): H-tiling for spatial planes whose padded footprint exceeds
        # the per-generation VMEM budget (fall back to XLA pad instead for now).
        return jnp.pad(x, ((0, 0), (0, 0), (pt, pb), (plft, prgt)))

    # Channel tile: big enough for long DMAs (~few MiB padded blocks), small
    # enough that the grid keeps several steps (read/write overlap, v7x
    # megacore sharding) and the double-buffered footprint fits the budget.
    c_tile = int(min(c,
                     max(1, _TARGET_BLOCK_BYTES // single_ch),
                     max(1, budget // double_ch)))
    num_c_blocks = pl.cdiv(c, c_tile)   # non-divisor C: ragged edge block is
                                        # handled by Pallas (OOB writes dropped)

    kernel = functools.partial(
        _pad_kernel,
        pad_top=pt, pad_bottom=pb, pad_left=plft, pad_right=prgt,
        in_h=in_h, in_w=in_w,
    )

    return pl.pallas_call(
        kernel,
        out_shape=jax.ShapeDtypeStruct((n, c, out_h, out_w), x.dtype),
        grid_spec=pltpu.PrefetchScalarGridSpec(
            num_scalar_prefetch=0,
            grid=(n, num_c_blocks),
            in_specs=[
                pl.BlockSpec((1, c_tile, in_h, in_w), lambda i, j: (i, j, 0, 0)),
            ],
            out_specs=pl.BlockSpec(
                (1, c_tile, out_h, out_w), lambda i, j: (i, j, 0, 0)),
        ),
        compiler_params=pltpu.CompilerParams(
            dimension_semantics=("parallel", "parallel"),
            vmem_limit_bytes=vmem_limit,
        ),
    )(x)


if __name__ == "__main__":
    key = jax.random.PRNGKey(0)
    # Small NCHW input consistent with the module's forward.
    x = jax.random.normal(key, (2, 4, 16, 16), dtype=jnp.float32)

    kernel_size = 3
    stride = 2

    # Force the Pallas path (auto heuristic would route this tiny demo to the
    # jnp.pad fast path).
    out = conv2d_same_pad(x, kernel_size, stride, use_pallas=True)
    out = jax.block_until_ready(out)

    # Reference check in plain JAX (same arithmetic as the PyTorch module).
    pt, pb, plft, prgt = _same_pad_amounts(
        x.shape[2], x.shape[3], [kernel_size, kernel_size], [stride, stride])
    ref = jnp.pad(x, ((0, 0), (0, 0), (pt, pb), (plft, prgt)))
    assert out.shape == ref.shape, (out.shape, ref.shape)
    assert jnp.allclose(out, ref), "mismatch vs reference padding"

    # Negative-'SAME'-pad (crop) parity check: kernel=1, stride=2 crops 1 row
    # and 1 column at the top/left, exactly like F.pad with negative pads.
    out_crop = conv2d_same_pad(x, 1, 2)
    out_crop = jax.block_until_ready(out_crop)
    assert out_crop.shape == (2, 4, 15, 15), out_crop.shape
    assert jnp.allclose(out_crop, x[:, :, 1:, 1:]), "mismatch vs crop reference"

    print("KERNEL_OK")
</pallas_src>

<mosaic_0001>
module attributes {stable_mosaic.version = 11 : i64} {
  func.func @_pad_kernel(%arg0: i32, %arg1: i32, %arg2: memref<1x4x16x16xf32, #tpu.memory_space<vmem>>, %arg3: memref<1x4x17x17xf32, #tpu.memory_space<vmem>>) attributes {dimension_semantics = [#tpu.dimension_semantics<parallel>, #tpu.dimension_semantics<parallel>], iteration_bounds = array<i64: 2, 1>, scalar_prefetch = 0 : i64, scratch_operands = 0 : i64, tpu.core_type = #tpu.core_type<tc>, window_params = [{transform_indices = @transform_0, window_bounds = array<i64: 1, 4, 16, 16>}, {transform_indices = @transform_1, window_bounds = array<i64: 1, 4, 17, 17>}]} {
    %cst = arith.constant 0.000000e+00 : f32
    %0 = vector.broadcast %cst : f32 to vector<1x4x1x17xf32>
    %c0 = arith.constant 0 : index
    %c0_0 = arith.constant 0 : index
    %c16 = arith.constant 16 : index
    %c0_1 = arith.constant 0 : index
    %1 = vector.load %arg3[%c0, %c0_0, %c16, %c0_1] : memref<1x4x17x17xf32, #tpu.memory_space<vmem>>, vector<1x4x1x17xf32>
    tpu.vector_store %arg3[%c0, %c0_0, %c16, %c0_1], %0 {strides = array<i32>} : memref<1x4x17x17xf32, #tpu.memory_space<vmem>>, vector<1x4x1x17xf32>,
    %c0_2 = arith.constant 0 : index
    %c0_3 = arith.constant 0 : index
    %c0_4 = arith.constant 0 : index
    %c0_5 = arith.constant 0 : index
    %2 = vector.load %arg2[%c0_2, %c0_3, %c0_4, %c0_5] : memref<1x4x16x16xf32, #tpu.memory_space<vmem>>, vector<1x4x16x16xf32>
    %cst_6 = arith.constant 0.000000e+00 : f32
    %3 = vector.broadcast %cst_6 : f32 to vector<1x4x16x1xf32>
    %4 = tpu.concatenate %2, %3 in 3 : vector<1x4x16x16xf32>, vector<1x4x16x1xf32> -> vector<1x4x16x17xf32>
    %c0_7 = arith.constant 0 : index
    %c0_8 = arith.constant 0 : index
    %c0_9 = arith.constant 0 : index
    %c0_10 = arith.constant 0 : index
    %5 = vector.load %arg3[%c0_7, %c0_8, %c0_9, %c0_10] : memref<1x4x17x17xf32, #tpu.memory_space<vmem>>, vector<1x4x16x17xf32>
    tpu.vector_store %arg3[%c0_7, %c0_8, %c0_9, %c0_10], %4 {strides = array<i32>} : memref<1x4x17x17xf32, #tpu.memory_space<vmem>>, vector<1x4x16x17xf32>,
    return
  }
  func.func @transform_0(%arg0: i32, %arg1: i32) -> (i32, i32, i32, i32) {
    %c0_i32 = arith.constant 0 : i32
    %c0_i32_0 = arith.constant 0 : i32
    %c0_i32_1 = arith.constant 0 : i32
    return %arg0, %arg1, %c0_i32, %c0_i32_0 : i32, i32, i32, i32
  }
  func.func @transform_1(%arg0: i32, %arg1: i32) -> (i32, i32, i32, i32) {
    %c0_i32 = arith.constant 0 : i32
    %c0_i32_0 = arith.constant 0 : i32
    %c0_i32_1 = arith.constant 0 : i32
    return %arg0, %arg1, %c0_i32, %c0_i32_0 : i32, i32, i32, i32
  }
}

</mosaic_0001>

<llo_original>
// kernel: tpu_custom_call.1
$region0: #{tpu_custom_call.1}
  #allocation0 [shape = 'u32[]', space=smem, size = 0x4, offset = 0x4, fixed_abs, tag = 'smem constant byte address 0x4 - core index']
  #allocation1 [shape = 'u32[144,128]{1,0:T(1,128)}', space=vmem, size = 0x12000, scoped, tag = 'internal scratch']
  %s0 = inlined_call_operand.hbm [shape: f32[2,4,16,16], index: 0, kind: input, shape index: {}]
  %s1 = inlined_call_operand.vmem [shape: f32[2,4,17,17], index: 1, kind: output, shape index: {}]
  %s2 = sld [smem:[#allocation0]]
  $region41: #{tpu_custom_call.1} parent=0
    _
  %s4 = ssub.s32 1, %s2
  %s5 = scalar_select 0, %s4, %s2
  $region1: #{tpu_custom_call.1} parent=0
    #allocation2 [shape = 'u8[65536]{0}', space=vmem, size = 0x10000, scoped, tag = 'input window, operand 0']
    #allocation3 [shape = 's32[2]{0}', space=sflag, size = 0x8, scoped, tag = 'scoped memory for tpu_custom_call.1']
    %6 = vsyncpa [#allocation3], 0
    %s7 = scalar_lea.sflag [#allocation3], 1
    %8 = vsyncpa %s7, 0
    loop: start=0, step=1, limit=4
    $region2: #{tpu_custom_call.1} parent=1 // loop_pre_header
      _
    $region3: #{tpu_custom_call.1} parent=1 // loop_header
      %s10 = sphi 0, %s14
      %p11 = scmp.ge.s32.totalorder %s10, 4
      %s17 = sphi 0, %s29
      %s18 = sphi 0, %s25
      %s19 = sphi 0, %s17
      %s20 = sphi 0, %s18
      %s21 = sphi 0, %s19
      %s22 = sphi 0, %s20
      %s34 = sphi 0, %s36
      %s37 = sphi 0, %s34
      %s38 = sphi 0, %s37
      %s54 = sphi 0, %s38
      %s62 = sphi 0, %s64
      %s65 = sphi 0, %s62
      %s66 = sphi 0, %s65
      %s82 = sphi 0, %s66
    $region4: #{tpu_custom_call.1} parent=1 // loop_header_branch
      %13 = sbr.rel (%p11) target = $region8
    $region5: #{tpu_custom_call.1} parent=1 // loop_body
      %s15 = ssub.s32 %s10, 1
      %s16 = ssub.s32 %s10, 2
      %s23 = sadd.s32 1, %s18
      %p24 = scmp.ge.s32.totalorder %s23, 1
      %s25 = scalar_select %p24, 0, %s23
      %s26 = sadd.s32 1, %s17
      %s27 = scalar_select %p24, %s26, %s17
      %p28 = scmp.ge.s32.totalorder %s27, 2
      %s29 = scalar_select %p28, 0, %s27
      %s30 = ssub.s32 %s17, %s29
      %s31 = ssub.s32 %s18, %s25
      %s32 = sor.u32 %s30, %s31
      %p33 = scmp.eq.s32.totalorder %s32, 0
      %s35 = sadd.s32 %s34, 1
      %s36 = scalar_select %p33, %s34, %s35
      %p39 = pneg %p33
      %p40 = scmp.eq.s32.totalorder %s10, 1
      %p41 = por %p39, %p40
      %p42 = scmp.ne.s32.totalorder %s34, %s37
      %p43 = scmp.eq.s32.totalorder %s10, 0
      %p44 = por %p42, %p43
      %p45 = scmp.ne.s32.totalorder %s34, %s37
      %p46 = scmp.eq.s32.totalorder %s15, 1
      %p47 = por %p45, %p46
      %p48 = scmp.ne.s32.totalorder %s37, %s38
      %p49 = scmp.eq.s32.totalorder %s15, 0
      %p50 = por %p48, %p49
      %p51 = scmp.ne.s32.totalorder %s37, %s38
      %p52 = scmp.eq.s32.totalorder %s16, 1
      %p53 = por %p51, %p52
      %p55 = scmp.ne.s32.totalorder %s38, %s54
      %p56 = scmp.eq.s32.totalorder %s16, 0
      %p57 = por %p55, %p56
      %s58 = ssub.s32 %s17, %s29
      %s59 = ssub.s32 %s18, %s25
      %s60 = sor.u32 %s58, %s59
      %p61 = scmp.eq.s32.totalorder %s60, 0
      %s63 = sadd.s32 %s62, 1
      %s64 = scalar_select %p61, %s62, %s63
      %p67 = pneg %p61
      %p68 = scmp.eq.s32.totalorder %s10, 1
      %p69 = por %p67, %p68
      %p70 = scmp.ne.s32.totalorder %s62, %s65
      %p71 = scmp.eq.s32.totalorder %s10, 0
      %p72 = por %p70, %p71
      %p73 = scmp.ne.s32.totalorder %s62, %s65
      %p74 = scmp.eq.s32.totalorder %s15, 1
      %p75 = por %p73, %p74
      %p76 = scmp.ne.s32.totalorder %s65, %s66
      %p77 = scmp.eq.s32.totalorder %s15, 0
      %p78 = por %p76, %p77
      %p79 = scmp.ne.s32.totalorder %s65, %s66
      %p80 = scmp.eq.s32.totalorder %s16, 1
      %p81 = por %p79, %p80
      %p83 = scmp.ne.s32.totalorder %s66, %s82
      %p84 = scmp.eq.s32.totalorder %s16, 0
      %p85 = por %p83, %p84
      %p86 = scmp.le.s32.totalorder 1, %s10
      %p87 = scmp.lt.s32.totalorder %s10, 3
      %p88 = pnand %p86, %p87
      %p89 = pneg %p88
      // Predicated region
      $region9: #{tpu_custom_call.1} parent=5 // pred_check
        _
      $region10: #{tpu_custom_call.1} parent=5 // pred_check_branch
        %91 = sbr.rel (%p88) target = $region12
      $region11: #{tpu_custom_call.1} parent=5 // pred_region
        %s92 = ssub.s32 %s10, 1
      $region12: #{tpu_custom_call.1} parent=5 // pred_fallthru
        _
      %p93 = scmp.lt.s32.totalorder %s10, 2
      // Predicated region
      $region13: #{tpu_custom_call.1} parent=5 // pred_check
        %p94 = pneg %p93
      $region14: #{tpu_custom_call.1} parent=5 // pred_check_branch
        %96 = sbr.rel (%p94) target = $region16
      $region15: #{tpu_custom_call.1} parent=5 // pred_region
        // Predicated region
        $region17: #{tpu_custom_call.1} parent=15 // pred_check
          %p97 = pneg %p44
        $region18: #{tpu_custom_call.1} parent=15 // pred_check_branch
          %99 = sbr.rel (%p97) target = $region20
        $region19: #{tpu_custom_call.1} parent=15 // pred_region
          %s100 = sand.u32 %s34, 1
          %s101 = scalar_lea.sflag [#allocation3], %s100
          %s102 = sand.u32 %s34, 1
          %s103 = smul.addr %s102, 64
          %s104 = scalar_lea.vmem [#allocation2], %s103
          %s105 = smul.u32 4, %s18
          %s107 = ssub.s32 1024, 1024
          %108 = vsyncadd %s101, %s107
          %s109 = smul.addr %s105, 2
          %s110 = smul.addr %s17, 8
          %s111 = sadd.s32 %s109, %s110
          %s112 = smul.addr %s111, 128
          %s113 = scalar_lea.hbm %s0, %s112
          %s114 = sshll.u32 %s104, 4
          %s115 = int_to_ptr.vmem [resolvable:$true] %s114
          %120 = dma.hbm_to_vmem [thread:$0]  %s113, 1024, %s115, %s101, 128, 128, 8
        $region20: #{tpu_custom_call.1} parent=15 // pred_fallthru
          _
      $region16: #{tpu_custom_call.1} parent=5 // pred_fallthru
        _
      %p121 = scmp.le.s32.totalorder 1, %s10
      %p122 = scmp.lt.s32.totalorder %s10, 3
      %p123 = pnand %p121, %p122
      %p124 = pneg %p123
      // Predicated region
      $region21: #{tpu_custom_call.1} parent=5 // pred_check
        _
      $region22: #{tpu_custom_call.1} parent=5 // pred_check_branch
        %126 = sbr.rel (%p123) target = $region24
      $region23: #{tpu_custom_call.1} parent=5 // pred_region
        %s127 = ssub.s32 %s10, 1
        %s128 = sand.u32 %s37, 1
        %s129 = scalar_lea.sflag [#allocation3], %s128
        %s130 = sand.u32 %s37, 1
        %s131 = smul.addr %s130, 64
        %s132 = scalar_lea.vmem [#allocation2], %s131
        // Predicated region
        $region25: #{tpu_custom_call.1} parent=23 // pred_check
          %p133 = pneg %p50
        $region26: #{tpu_custom_call.1} parent=23 // pred_check_branch
          %135 = sbr.rel (%p133) target = $region28
        $region27: #{tpu_custom_call.1} parent=23 // pred_region
          %136 = dma.done %s129, 1024
        $region28: #{tpu_custom_call.1} parent=23 // pred_fallthru
          _
        %s137 = sand.u32 %s37, 1
        %s138 = scalar_lea.sflag [#allocation3], %s137
        %s139 = sand.u32 %s37, 1
        %s140 = smul.addr %s139, 64
        %s141 = scalar_lea.vmem [#allocation2], %s140
        %p142 = pneg %p50
        %p143 = pneg %p47
        %p144 = pneg %p78
        %p145 = pneg %p75
        %s146 = smul.u32 4, %s20
        %p147 = scmp.lt.s32.totalorder %s19, 1
        %s148 = scalar_select %p147, %s19, 1
        %p149 = scmp.lt.s32.totalorder %s146, 3
        %s150 = scalar_select %p149, %s146, 3
        %s151 = smul.addr %s150, 3
        %s152 = smul.addr %s148, 12
        %s153 = sadd.s32 %s151, %s152
        %s154 = smul.addr %s153, 8
        %s155 = scalar_lea.vmem %s1, %s154
        %s156 = smul.u32 4, %s20
        %s157 = smul.u32 4, %s20
        %p158 = scmp.lt.s32.totalorder %s19, 1
        %s159 = scalar_select %p158, %s19, 1
        %p160 = scmp.lt.s32.totalorder %s157, 3
        %s161 = scalar_select %p160, %s157, 3
        %s162 = smul.addr %s161, 3
        %s163 = smul.addr %s159, 12
        %s164 = sadd.s32 %s162, %s163
        %s165 = smul.addr %s164, 8
        %s166 = scalar_lea.vmem %s1, %s165
        %s167 = smul.u32 4, %s20
        %vm168 = vcmask 131072
        %169 = vst.msk [vmem:[%s166 + $0x10] sm:$0x1] %vm168, 0.0
        %170 = vst.msk [vmem:[%s166 + $0x28] sm:$0x1] %vm168, 0.0
        %171 = vst.msk [vmem:[%s166 + $0x40] sm:$0x1] %vm168, 0.0
        %172 = vst.msk [vmem:[%s166 + $0x58] sm:$0x1] %vm168, 0.0
        %v173 = vld [vmem:[%s132] sm:$0xff]
        %v174 = vld [vmem:[%s132 + $0x8] sm:$0xff]
        %v175 = vld [vmem:[%s132 + $0x10] sm:$0xff]
        %v176 = vld [vmem:[%s132 + $0x18] sm:$0xff]
        %v177 = vld [vmem:[%s132 + $0x20] sm:$0xff]
        %v178 = vld [vmem:[%s132 + $0x28] sm:$0xff]
        %v179 = vld [vmem:[%s132 + $0x30] sm:$0xff]
        %v180 = vld [vmem:[%s132 + $0x38] sm:$0xff]
        %vm181 = vcmask 130048
        %v182 = vsel %vm181, %v173, 0.0
        %v183 = vsel %vm181, %v174, 0.0
        %v184 = vsel %vm181, %v175, 0.0
        %v185 = vsel %vm181, %v176, 0.0
        %v186 = vsel %vm181, %v177, 0.0
        %v187 = vsel %vm181, %v178, 0.0
        %v188 = vsel %vm181, %v179, 0.0
        %v189 = vsel %vm181, %v180, 0.0
        %vm190 = vcmask 138240
        %191 = vst.msk [vmem:[%s166] sm:$0xff] %vm190, %v182
        %192 = vst.msk [vmem:[%s166 + $0x8] sm:$0xff] %vm190, %v183
        %193 = vst.msk [vmem:[%s166 + $0x18] sm:$0xff] %vm190, %v184
        %194 = vst.msk [vmem:[%s166 + $0x20] sm:$0xff] %vm190, %v185
        %195 = vst.msk [vmem:[%s166 + $0x30] sm:$0xff] %vm190, %v186
        %196 = vst.msk [vmem:[%s166 + $0x38] sm:$0xff] %vm190, %v187
        %197 = vst.msk [vmem:[%s166 + $0x48] sm:$0xff] %vm190, %v188
        %198 = vst.msk [vmem:[%s166 + $0x50] sm:$0xff] %vm190, %v189
        %s199 = smul.u32 4, %s20
        %p200 = scmp.lt.s32.totalorder %s19, 1
        %s201 = scalar_select %p200, %s19, 1
        %p202 = scmp.lt.s32.totalorder %s199, 3
        %s203 = scalar_select %p202, %s199, 3
        %s204 = smul.addr %s203, 3
        %s205 = smul.addr %s201, 12
        %s206 = sadd.s32 %s204, %s205
        %s207 = smul.addr %s206, 8
        %s208 = scalar_lea.vmem %s1, %s207
        // Predicated region
        $region29: #{tpu_custom_call.1} parent=23 // pred_check
          %p209 = pneg %p75
        $region30: #{tpu_custom_call.1} parent=23 // pred_check_branch
          %211 = sbr.rel (%p209) target = $region32
        $region31: #{tpu_custom_call.1} parent=23 // pred_region
          %s212 = smul.u32 4, %s20
        $region32: #{tpu_custom_call.1} parent=23 // pred_fallthru
          _
      $region24: #{tpu_custom_call.1} parent=5 // pred_fallthru
        _
      %p213 = scmp.le.s32.totalorder 2, %s10
      // Predicated region
      $region33: #{tpu_custom_call.1} parent=5 // pred_check
        %p214 = pneg %p213
      $region34: #{tpu_custom_call.1} parent=5 // pred_check_branch
        %216 = sbr.rel (%p214) target = $region36
      $region35: #{tpu_custom_call.1} parent=5 // pred_region
        %s217 = ssub.s32 %s10, 2
        // Predicated region
        $region37: #{tpu_custom_call.1} parent=35 // pred_check
          %p218 = pneg %p81
        $region38: #{tpu_custom_call.1} parent=35 // pred_check_branch
          %220 = sbr.rel (%p218) target = $region40
        $region39: #{tpu_custom_call.1} parent=35 // pred_region
          %s221 = smul.u32 4, %s22
          %p222 = scmp.lt.s32.totalorder %s21, 1
          %s223 = scalar_select %p222, %s21, 1
          %p224 = scmp.lt.s32.totalorder %s221, 3
          %s225 = scalar_select %p224, %s221, 3
          %s226 = smul.addr %s225, 3
          %s227 = smul.addr %s223, 12
          %s228 = sadd.s32 %s226, %s227
          %s229 = smul.addr %s228, 8
          %s230 = scalar_lea.vmem %s1, %s229
        $region40: #{tpu_custom_call.1} parent=35 // pred_fallthru
          _
      $region36: #{tpu_custom_call.1} parent=5 // pred_fallthru
        _
    $region6: #{tpu_custom_call.1} parent=1 // loop_footer
      %s14 = sadd.s32 1, %s10
    $region7: #{tpu_custom_call.1} parent=1 // loop_footer_branch
      %9 = sbr.rel target = $region3
    $region8: #{tpu_custom_call.1} parent=1 // loop_exit
      _
    %231 = vsyncpa [#allocation3], 1
    %s232 = scalar_lea.sflag [#allocation3], 1
    %233 = vsyncpa %s232, 1

</llo_original>
